<compile_context>
chip_gen: v7x
topology: tpu7x:2x2x1
jax: 0.10.0
libtpu: 0.0.40
codegen_flags: <defaults>
</compile_context>

<pallas_src>
import jax
import jax.numpy as jnp
from jax import lax
from jax.experimental import pallas as pl
from jax.experimental.pallas import tpu as pltpu


def fused_lstm_classifier_kernel(ids_ref, table_ref, bias_ref, whh_ref,
                                 wfc_f_ref, wfc_b_ref, bfc_ref, out_ref):
    """Fused embedding-gather + biLSTM(last step) + FC.

    ids_ref:   (T*Bp, 1) int32   token ids, time-major flattening (row = t*Bp + b)
    table_ref: (V, 8H)   bf16    embedding @ [W_ih_f^T | W_ih_b^T]  (folded gather)
    bias_ref:  (1, 8H)   f32     [b_ih_f + b_hh_f | b_ih_b + b_hh_b]
    whh_ref:   (H, 4H)   bf16    forward hidden->gates weight (pre-transposed)
    wfc_f_ref: (H, C)    f32     FC weight half acting on the forward hidden
    wfc_b_ref: (H, C)    f32     FC weight half acting on the reverse hidden
    bfc_ref:   (1, C)    f32     FC bias
    out_ref:   (Bp, C)   f32     logits (padded batch; caller slices [:B])
    """
    TBp = ids_ref.shape[0]
    V = table_ref.shape[0]
    H = whh_ref.shape[0]
    Bp, _ = out_ref.shape
    T = TBp // Bp
    H4 = 4 * H

    # ---- Embedding gather fused with BOTH directions' input projections. ----
    # One-hot on the MXU against the pre-folded (V, 8H) table: single 256-wide
    # bf16 matmul with f32 accumulation; biases folded in here once.
    ids = ids_ref[...]                                           # (T*Bp, 1) int32
    iota_v = lax.broadcasted_iota(jnp.int32, (TBp, V), 1)        # (T*Bp, V)
    onehot = (ids == iota_v).astype(jnp.bfloat16)                # exact in bf16
    x_proj = jnp.dot(onehot, table_ref[...],
                     preferred_element_type=jnp.float32) + bias_ref[...]  # (T*Bp, 8H)

    # Forward-direction pre-activations as aligned (Bp, 4H) tiles per step.
    x_f = x_proj[:, 0:H4].reshape(T, Bp, H4)                     # (T, Bp, 4H)
    whh = whh_ref[...]                                           # (H, 4H) bf16

    # ---- Forward LSTM recurrence, fully unrolled; only h @ W_hh per step. ----
    h = jnp.zeros((Bp, H), jnp.float32)
    c = jnp.zeros((Bp, H), jnp.float32)
    for t in range(T):
        gates = x_f[t] + jnp.dot(h.astype(jnp.bfloat16), whh,
                                 preferred_element_type=jnp.float32)  # (Bp, 4H) [i,f,g,o]
        # 3 full-vreg EUP ops per step: tanh(0.5*gates), tanh(gates), tanh(c).
        sg = 0.5 * (jnp.tanh(0.5 * gates) + 1.0)                 # sigmoid(gates)
        tg = jnp.tanh(gates)
        i_g = sg[:, 0:H]
        f_g = sg[:, H:2 * H]
        g_g = tg[:, 2 * H:3 * H]
        o_g = sg[:, 3 * H:4 * H]
        c = f_g * c + i_g * g_g
        h = o_g * jnp.tanh(c)

    # ---- Reverse direction: exactly ONE step on x[T-1] from (h0, c0) = 0. ----
    # PyTorch bidirectional output[:, -1, H:] is the reverse LSTM after its
    # first step; h0 = 0 kills the h @ W_hh_b term and f*c0 == 0.
    gates_b = x_proj[(T - 1) * Bp:T * Bp, H4:2 * H4]             # (Bp, 4H)
    sg_b = 0.5 * (jnp.tanh(0.5 * gates_b) + 1.0)
    tg_b = jnp.tanh(gates_b)
    c_b = sg_b[:, 0:H] * tg_b[:, 2 * H:3 * H]
    h_b = sg_b[:, 3 * H:4 * H] * jnp.tanh(c_b)

    # Dropout(0.2): identity in eval mode.
    # TODO(synk): training-mode dropout mask (pltpu.prng_*) not implemented.

    # ---- FC head without concat: [h, h_b] @ W_fc^T == h @ Wf + h_b @ Wb. ----
    out_ref[...] = (jnp.dot(h, wfc_f_ref[...], preferred_element_type=jnp.float32)
                    + jnp.dot(h_b, wfc_b_ref[...], preferred_element_type=jnp.float32)
                    + bfc_ref[...])


def lstm_classifier_forward(x_ids, params):
    B, T = x_ids.shape
    H = params["w_hh_f"].shape[1]
    C = params["b_fc"].shape[0]
    Bp = ((B + 7) // 8) * 8          # pad batch to a full sublane tile
    hi = jax.lax.Precision.HIGHEST

    # Time-major flattened, batch-padded ids: row index = t*Bp + b.
    ids_pad = jnp.zeros((Bp, T), jnp.int32).at[:B, :].set(x_ids.astype(jnp.int32))
    ids_tm = jnp.transpose(ids_pad).reshape(T * Bp, 1)

    # Fold the embedding table into both directions' input projections:
    # (V, 8H) gather table, cast to bf16 for the MXU (fold itself in f32).
    wih_cat = jnp.concatenate([jnp.transpose(params["w_ih_f"]),
                               jnp.transpose(params["w_ih_b"])], axis=1)   # (E, 8H)
    table = jnp.dot(params["embedding"], wih_cat,
                    precision=hi).astype(jnp.bfloat16)                     # (V, 8H)
    bias = jnp.concatenate([params["b_ih_f"] + params["b_hh_f"],
                            params["b_ih_b"] + params["b_hh_b"]]).reshape(1, 8 * H)

    whh_f = jnp.transpose(params["w_hh_f"]).astype(jnp.bfloat16)           # (H, 4H)
    # W_hh_b is unused: only the reverse hidden after one step from a zero
    # state is consumed, so its h @ W_hh_b term is identically zero.

    wfc_t = jnp.transpose(params["w_fc"])                                  # (2H, C)
    wfc_f = wfc_t[:H, :]
    wfc_b = wfc_t[H:, :]
    bfc = params["b_fc"].reshape(1, C)

    logits_pad = pl.pallas_call(
        fused_lstm_classifier_kernel,
        out_shape=jax.ShapeDtypeStruct((Bp, C), jnp.float32),
        in_specs=[pl.BlockSpec(memory_space=pltpu.MemorySpace.VMEM)] * 7,
        out_specs=pl.BlockSpec(memory_space=pltpu.MemorySpace.VMEM),
    )(ids_tm, table, bias, whh_f, wfc_f, wfc_b, bfc)
    return logits_pad[:B]


def reference_forward(x_ids, params):
    """Pure-JAX replica of the PyTorch module (eval mode), full bidirectional run."""
    hi = jax.lax.Precision.HIGHEST
    emb = params["embedding"][x_ids]                            # (B, T, E)
    B, T, _ = emb.shape
    H = params["w_hh_f"].shape[1]

    def cell(h, c, x_t, w_ih, w_hh, b_ih, b_hh):
        gates = (jnp.dot(x_t, w_ih.T, precision=hi)
                 + jnp.dot(h, w_hh.T, precision=hi) + b_ih + b_hh)
        i = jax.nn.sigmoid(gates[:, 0:H])
        f = jax.nn.sigmoid(gates[:, H:2 * H])
        g = jnp.tanh(gates[:, 2 * H:3 * H])
        o = jax.nn.sigmoid(gates[:, 3 * H:4 * H])
        c2 = f * c + i * g
        return o * jnp.tanh(c2), c2

    h = jnp.zeros((B, H), jnp.float32)
    c = jnp.zeros((B, H), jnp.float32)
    for t in range(T):
        h, c = cell(h, c, emb[:, t], params["w_ih_f"], params["w_hh_f"],
                    params["b_ih_f"], params["b_hh_f"])
    h_fwd_last = h

    hb = jnp.zeros((B, H), jnp.float32)
    cb = jnp.zeros((B, H), jnp.float32)
    out_rev_at_last = None
    for t in range(T - 1, -1, -1):
        hb, cb = cell(hb, cb, emb[:, t], params["w_ih_b"], params["w_hh_b"],
                      params["b_ih_b"], params["b_hh_b"])
        if t == T - 1:
            out_rev_at_last = hb

    h_cat = jnp.concatenate([h_fwd_last, out_rev_at_last], axis=-1)
    return jnp.dot(h_cat, params["w_fc"].T, precision=hi) + params["b_fc"]


if __name__ == "__main__":
    vocab_size, embed_dim, lstm_units, num_classes = 64, 16, 32, 8
    B, T = 2, 8
    H = lstm_units

    key = jax.random.PRNGKey(0)
    ks = jax.random.split(key, 12)

    k_lstm = 1.0 / float(H) ** 0.5
    k_fc = 1.0 / float(2 * H) ** 0.5

    def u(k, shape, scale):
        return jax.random.uniform(k, shape, jnp.float32, -scale, scale)

    params = {
        # nn.Embedding default init: N(0, 1)
        "embedding": jax.random.normal(ks[0], (vocab_size, embed_dim), jnp.float32),
        # nn.LSTM (bidirectional) weights, PyTorch shapes, U(-1/sqrt(H), 1/sqrt(H))
        "w_ih_f": u(ks[1], (4 * H, embed_dim), k_lstm),
        "w_hh_f": u(ks[2], (4 * H, H), k_lstm),
        "b_ih_f": u(ks[3], (4 * H,), k_lstm),
        "b_hh_f": u(ks[4], (4 * H,), k_lstm),
        "w_ih_b": u(ks[5], (4 * H, embed_dim), k_lstm),
        "w_hh_b": u(ks[6], (4 * H, H), k_lstm),
        "b_ih_b": u(ks[7], (4 * H,), k_lstm),
        "b_hh_b": u(ks[8], (4 * H,), k_lstm),
        # nn.Linear(2H, C)
        "w_fc": u(ks[9], (num_classes, 2 * H), k_fc),
        "b_fc": u(ks[10], (num_classes,), k_fc),
    }

    x_ids = jax.random.randint(ks[11], (B, T), 0, vocab_size, dtype=jnp.int32)

    logits = jax.jit(lstm_classifier_forward)(x_ids, params)
    jax.block_until_ready(logits)
    assert logits.shape == (B, num_classes)
    assert logits.dtype == jnp.float32

    # Sanity-check against a spec-faithful pure-JAX bidirectional reference.
    # Kernel uses bf16 MXU inputs (f32 accumulation); reference is f32 HIGHEST,
    # so the tolerance is relaxed vs a pure-f32 kernel (expected ~1e-2 worst case).
    ref = reference_forward(x_ids, params)
    max_err = float(jnp.max(jnp.abs(logits - ref)))
    assert max_err < 2e-2, f"max abs error {max_err}"

    print("KERNEL_OK")
</pallas_src>

<mosaic_0001>
module attributes {stable_mosaic.version = 11 : i64} {
  func.func @fused_lstm_classifier_kernel(%arg0: memref<64x1xi32, #tpu.memory_space<vmem>>, %arg1: memref<64x256xbf16, #tpu.memory_space<vmem>>, %arg2: memref<1x256xf32, #tpu.memory_space<vmem>>, %arg3: memref<32x128xbf16, #tpu.memory_space<vmem>>, %arg4: memref<32x8xf32, #tpu.memory_space<vmem>>, %arg5: memref<32x8xf32, #tpu.memory_space<vmem>>, %arg6: memref<1x8xf32, #tpu.memory_space<vmem>>, %arg7: memref<8x8xf32, #tpu.memory_space<vmem>>) attributes {dimension_semantics = [], scalar_prefetch = 0 : i64, scratch_operands = 0 : i64, tpu.core_type = #tpu.core_type<tc>} {
    %c0 = arith.constant 0 : index
    %c0_0 = arith.constant 0 : index
    %0 = vector.load %arg0[%c0, %c0_0] : memref<64x1xi32, #tpu.memory_space<vmem>>, vector<64x1xi32>
    %1 = tpu.iota {dimensions = array<i32: 1>} : vector<64x64xi32>
    %2 = vector.broadcast %0 : vector<64x1xi32> to vector<64x64xi32>
    %3 = arith.cmpi eq, %2, %1 : vector<64x64xi32>
    %4 = arith.extui %3 : vector<64x64xi1> to vector<64x64xi32>
    %5 = arith.sitofp %4 : vector<64x64xi32> to vector<64x64xf32>
    %6 = arith.truncf %5 : vector<64x64xf32> to vector<64x64xbf16>
    %c0_1 = arith.constant 0 : index
    %c0_2 = arith.constant 0 : index
    %7 = vector.load %arg1[%c0_1, %c0_2] : memref<64x256xbf16, #tpu.memory_space<vmem>>, vector<64x256xbf16>
    %cst = arith.constant dense<0.000000e+00> : vector<64x256xf32>
    %8 = tpu.matmul %6, %7, %cst {dimension_numbers = #tpu.dot_dimension_numbers<[1], [0], [0], [1], [0, 0, 1, 1], [], []>} : vector<64x64xbf16>, vector<64x256xbf16>, vector<64x256xf32> -> vector<64x256xf32>
    %c0_3 = arith.constant 0 : index
    %c0_4 = arith.constant 0 : index
    %9 = vector.load %arg2[%c0_3, %c0_4] : memref<1x256xf32, #tpu.memory_space<vmem>>, vector<1x256xf32>
    %10 = vector.broadcast %9 : vector<1x256xf32> to vector<64x256xf32>
    %11 = arith.addf %8, %10 : vector<64x256xf32>
    %12 = vector.extract_strided_slice %11 {offsets = [0, 0], sizes = [64, 128], strides = [1, 1]} : vector<64x256xf32> to vector<64x128xf32>
    %13 = vector.shape_cast %12 : vector<64x128xf32> to vector<8x8x128xf32>
    %c0_5 = arith.constant 0 : index
    %c0_6 = arith.constant 0 : index
    %14 = vector.load %arg3[%c0_5, %c0_6] : memref<32x128xbf16, #tpu.memory_space<vmem>>, vector<32x128xbf16>
    %cst_7 = arith.constant 0.000000e+00 : f32
    %15 = vector.broadcast %cst_7 : f32 to vector<8x32xf32>
    %cst_8 = arith.constant 0.000000e+00 : f32
    %16 = vector.broadcast %cst_8 : f32 to vector<8x32xf32>
    %17 = vector.extract_strided_slice %13 {offsets = [0, 0, 0], sizes = [1, 8, 128], strides = [1, 1, 1]} : vector<8x8x128xf32> to vector<1x8x128xf32>
    %18 = vector.shape_cast %17 : vector<1x8x128xf32> to vector<8x128xf32>
    %19 = arith.truncf %15 : vector<8x32xf32> to vector<8x32xbf16>
    %cst_9 = arith.constant dense<0.000000e+00> : vector<8x128xf32>
    %20 = tpu.matmul %19, %14, %cst_9 {dimension_numbers = #tpu.dot_dimension_numbers<[1], [0], [0], [1], [0, 0, 1, 1], [], []>} : vector<8x32xbf16>, vector<32x128xbf16>, vector<8x128xf32> -> vector<8x128xf32>
    %21 = arith.addf %18, %20 : vector<8x128xf32>
    %cst_10 = arith.constant 5.000000e-01 : f32
    %22 = vector.broadcast %cst_10 : f32 to vector<8x128xf32>
    %23 = arith.mulf %22, %21 : vector<8x128xf32>
    %24 = math.tanh %23 : vector<8x128xf32>
    %cst_11 = arith.constant 1.000000e+00 : f32
    %25 = vector.broadcast %cst_11 : f32 to vector<8x128xf32>
    %26 = arith.addf %24, %25 : vector<8x128xf32>
    %cst_12 = arith.constant 5.000000e-01 : f32
    %27 = vector.broadcast %cst_12 : f32 to vector<8x128xf32>
    %28 = arith.mulf %27, %26 : vector<8x128xf32>
    %29 = math.tanh %21 : vector<8x128xf32>
    %30 = vector.extract_strided_slice %28 {offsets = [0, 0], sizes = [8, 32], strides = [1, 1]} : vector<8x128xf32> to vector<8x32xf32>
    %31 = vector.extract_strided_slice %28 {offsets = [0, 32], sizes = [8, 32], strides = [1, 1]} : vector<8x128xf32> to vector<8x32xf32>
    %32 = vector.extract_strided_slice %29 {offsets = [0, 64], sizes = [8, 32], strides = [1, 1]} : vector<8x128xf32> to vector<8x32xf32>
    %33 = vector.extract_strided_slice %28 {offsets = [0, 96], sizes = [8, 32], strides = [1, 1]} : vector<8x128xf32> to vector<8x32xf32>
    %34 = arith.mulf %31, %16 : vector<8x32xf32>
    %35 = arith.mulf %30, %32 : vector<8x32xf32>
    %36 = arith.addf %34, %35 : vector<8x32xf32>
    %37 = math.tanh %36 : vector<8x32xf32>
    %38 = arith.mulf %33, %37 : vector<8x32xf32>
    %39 = vector.extract_strided_slice %13 {offsets = [1, 0, 0], sizes = [1, 8, 128], strides = [1, 1, 1]} : vector<8x8x128xf32> to vector<1x8x128xf32>
    %40 = vector.shape_cast %39 : vector<1x8x128xf32> to vector<8x128xf32>
    %41 = arith.truncf %38 : vector<8x32xf32> to vector<8x32xbf16>
    %cst_13 = arith.constant dense<0.000000e+00> : vector<8x128xf32>
    %42 = tpu.matmul %41, %14, %cst_13 {dimension_numbers = #tpu.dot_dimension_numbers<[1], [0], [0], [1], [0, 0, 1, 1], [], []>} : vector<8x32xbf16>, vector<32x128xbf16>, vector<8x128xf32> -> vector<8x128xf32>
    %43 = arith.addf %40, %42 : vector<8x128xf32>
    %cst_14 = arith.constant 5.000000e-01 : f32
    %44 = vector.broadcast %cst_14 : f32 to vector<8x128xf32>
    %45 = arith.mulf %44, %43 : vector<8x128xf32>
    %46 = math.tanh %45 : vector<8x128xf32>
    %cst_15 = arith.constant 1.000000e+00 : f32
    %47 = vector.broadcast %cst_15 : f32 to vector<8x128xf32>
    %48 = arith.addf %46, %47 : vector<8x128xf32>
    %cst_16 = arith.constant 5.000000e-01 : f32
    %49 = vector.broadcast %cst_16 : f32 to vector<8x128xf32>
    %50 = arith.mulf %49, %48 : vector<8x128xf32>
    %51 = math.tanh %43 : vector<8x128xf32>
    %52 = vector.extract_strided_slice %50 {offsets = [0, 0], sizes = [8, 32], strides = [1, 1]} : vector<8x128xf32> to vector<8x32xf32>
    %53 = vector.extract_strided_slice %50 {offsets = [0, 32], sizes = [8, 32], strides = [1, 1]} : vector<8x128xf32> to vector<8x32xf32>
    %54 = vector.extract_strided_slice %51 {offsets = [0, 64], sizes = [8, 32], strides = [1, 1]} : vector<8x128xf32> to vector<8x32xf32>
    %55 = vector.extract_strided_slice %50 {offsets = [0, 96], sizes = [8, 32], strides = [1, 1]} : vector<8x128xf32> to vector<8x32xf32>
    %56 = arith.mulf %53, %36 : vector<8x32xf32>
    %57 = arith.mulf %52, %54 : vector<8x32xf32>
    %58 = arith.addf %56, %57 : vector<8x32xf32>
    %59 = math.tanh %58 : vector<8x32xf32>
    %60 = arith.mulf %55, %59 : vector<8x32xf32>
    %61 = vector.extract_strided_slice %13 {offsets = [2, 0, 0], sizes = [1, 8, 128], strides = [1, 1, 1]} : vector<8x8x128xf32> to vector<1x8x128xf32>
    %62 = vector.shape_cast %61 : vector<1x8x128xf32> to vector<8x128xf32>
    %63 = arith.truncf %60 : vector<8x32xf32> to vector<8x32xbf16>
    %cst_17 = arith.constant dense<0.000000e+00> : vector<8x128xf32>
    %64 = tpu.matmul %63, %14, %cst_17 {dimension_numbers = #tpu.dot_dimension_numbers<[1], [0], [0], [1], [0, 0, 1, 1], [], []>} : vector<8x32xbf16>, vector<32x128xbf16>, vector<8x128xf32> -> vector<8x128xf32>
    %65 = arith.addf %62, %64 : vector<8x128xf32>
    %cst_18 = arith.constant 5.000000e-01 : f32
    %66 = vector.broadcast %cst_18 : f32 to vector<8x128xf32>
    %67 = arith.mulf %66, %65 : vector<8x128xf32>
    %68 = math.tanh %67 : vector<8x128xf32>
    %cst_19 = arith.constant 1.000000e+00 : f32
    %69 = vector.broadcast %cst_19 : f32 to vector<8x128xf32>
    %70 = arith.addf %68, %69 : vector<8x128xf32>
    %cst_20 = arith.constant 5.000000e-01 : f32
    %71 = vector.broadcast %cst_20 : f32 to vector<8x128xf32>
    %72 = arith.mulf %71, %70 : vector<8x128xf32>
    %73 = math.tanh %65 : vector<8x128xf32>
    %74 = vector.extract_strided_slice %72 {offsets = [0, 0], sizes = [8, 32], strides = [1, 1]} : vector<8x128xf32> to vector<8x32xf32>
    %75 = vector.extract_strided_slice %72 {offsets = [0, 32], sizes = [8, 32], strides = [1, 1]} : vector<8x128xf32> to vector<8x32xf32>
    %76 = vector.extract_strided_slice %73 {offsets = [0, 64], sizes = [8, 32], strides = [1, 1]} : vector<8x128xf32> to vector<8x32xf32>
    %77 = vector.extract_strided_slice %72 {offsets = [0, 96], sizes = [8, 32], strides = [1, 1]} : vector<8x128xf32> to vector<8x32xf32>
    %78 = arith.mulf %75, %58 : vector<8x32xf32>
    %79 = arith.mulf %74, %76 : vector<8x32xf32>
    %80 = arith.addf %78, %79 : vector<8x32xf32>
    %81 = math.tanh %80 : vector<8x32xf32>
    %82 = arith.mulf %77, %81 : vector<8x32xf32>
    %83 = vector.extract_strided_slice %13 {offsets = [3, 0, 0], sizes = [1, 8, 128], strides = [1, 1, 1]} : vector<8x8x128xf32> to vector<1x8x128xf32>
    %84 = vector.shape_cast %83 : vector<1x8x128xf32> to vector<8x128xf32>
    %85 = arith.truncf %82 : vector<8x32xf32> to vector<8x32xbf16>
    %cst_21 = arith.constant dense<0.000000e+00> : vector<8x128xf32>
    %86 = tpu.matmul %85, %14, %cst_21 {dimension_numbers = #tpu.dot_dimension_numbers<[1], [0], [0], [1], [0, 0, 1, 1], [], []>} : vector<8x32xbf16>, vector<32x128xbf16>, vector<8x128xf32> -> vector<8x128xf32>
    %87 = arith.addf %84, %86 : vector<8x128xf32>
    %cst_22 = arith.constant 5.000000e-01 : f32
    %88 = vector.broadcast %cst_22 : f32 to vector<8x128xf32>
    %89 = arith.mulf %88, %87 : vector<8x128xf32>
    %90 = math.tanh %89 : vector<8x128xf32>
    %cst_23 = arith.constant 1.000000e+00 : f32
    %91 = vector.broadcast %cst_23 : f32 to vector<8x128xf32>
    %92 = arith.addf %90, %91 : vector<8x128xf32>
    %cst_24 = arith.constant 5.000000e-01 : f32
    %93 = vector.broadcast %cst_24 : f32 to vector<8x128xf32>
    %94 = arith.mulf %93, %92 : vector<8x128xf32>
    %95 = math.tanh %87 : vector<8x128xf32>
    %96 = vector.extract_strided_slice %94 {offsets = [0, 0], sizes = [8, 32], strides = [1, 1]} : vector<8x128xf32> to vector<8x32xf32>
    %97 = vector.extract_strided_slice %94 {offsets = [0, 32], sizes = [8, 32], strides = [1, 1]} : vector<8x128xf32> to vector<8x32xf32>
    %98 = vector.extract_strided_slice %95 {offsets = [0, 64], sizes = [8, 32], strides = [1, 1]} : vector<8x128xf32> to vector<8x32xf32>
    %99 = vector.extract_strided_slice %94 {offsets = [0, 96], sizes = [8, 32], strides = [1, 1]} : vector<8x128xf32> to vector<8x32xf32>
    %100 = arith.mulf %97, %80 : vector<8x32xf32>
    %101 = arith.mulf %96, %98 : vector<8x32xf32>
    %102 = arith.addf %100, %101 : vector<8x32xf32>
    %103 = math.tanh %102 : vector<8x32xf32>
    %104 = arith.mulf %99, %103 : vector<8x32xf32>
    %105 = vector.extract_strided_slice %13 {offsets = [4, 0, 0], sizes = [1, 8, 128], strides = [1, 1, 1]} : vector<8x8x128xf32> to vector<1x8x128xf32>
    %106 = vector.shape_cast %105 : vector<1x8x128xf32> to vector<8x128xf32>
    %107 = arith.truncf %104 : vector<8x32xf32> to vector<8x32xbf16>
    %cst_25 = arith.constant dense<0.000000e+00> : vector<8x128xf32>
    %108 = tpu.matmul %107, %14, %cst_25 {dimension_numbers = #tpu.dot_dimension_numbers<[1], [0], [0], [1], [0, 0, 1, 1], [], []>} : vector<8x32xbf16>, vector<32x128xbf16>, vector<8x128xf32> -> vector<8x128xf32>
    %109 = arith.addf %106, %108 : vector<8x128xf32>
    %cst_26 = arith.constant 5.000000e-01 : f32
    %110 = vector.broadcast %cst_26 : f32 to vector<8x128xf32>
    %111 = arith.mulf %110, %109 : vector<8x128xf32>
    %112 = math.tanh %111 : vector<8x128xf32>
    %cst_27 = arith.constant 1.000000e+00 : f32
    %113 = vector.broadcast %cst_27 : f32 to vector<8x128xf32>
    %114 = arith.addf %112, %113 : vector<8x128xf32>
    %cst_28 = arith.constant 5.000000e-01 : f32
    %115 = vector.broadcast %cst_28 : f32 to vector<8x128xf32>
    %116 = arith.mulf %115, %114 : vector<8x128xf32>
    %117 = math.tanh %109 : vector<8x128xf32>
    %118 = vector.extract_strided_slice %116 {offsets = [0, 0], sizes = [8, 32], strides = [1, 1]} : vector<8x128xf32> to vector<8x32xf32>
    %119 = vector.extract_strided_slice %116 {offsets = [0, 32], sizes = [8, 32], strides = [1, 1]} : vector<8x128xf32> to vector<8x32xf32>
    %120 = vector.extract_strided_slice %117 {offsets = [0, 64], sizes = [8, 32], strides = [1, 1]} : vector<8x128xf32> to vector<8x32xf32>
    %121 = vector.extract_strided_slice %116 {offsets = [0, 96], sizes = [8, 32], strides = [1, 1]} : vector<8x128xf32> to vector<8x32xf32>
    %122 = arith.mulf %119, %102 : vector<8x32xf32>
    %123 = arith.mulf %118, %120 : vector<8x32xf32>
    %124 = arith.addf %122, %123 : vector<8x32xf32>
    %125 = math.tanh %124 : vector<8x32xf32>
    %126 = arith.mulf %121, %125 : vector<8x32xf32>
    %127 = vector.extract_strided_slice %13 {offsets = [5, 0, 0], sizes = [1, 8, 128], strides = [1, 1, 1]} : vector<8x8x128xf32> to vector<1x8x128xf32>
    %128 = vector.shape_cast %127 : vector<1x8x128xf32> to vector<8x128xf32>
    %129 = arith.truncf %126 : vector<8x32xf32> to vector<8x32xbf16>
    %cst_29 = arith.constant dense<0.000000e+00> : vector<8x128xf32>
    %130 = tpu.matmul %129, %14, %cst_29 {dimension_numbers = #tpu.dot_dimension_numbers<[1], [0], [0], [1], [0, 0, 1, 1], [], []>} : vector<8x32xbf16>, vector<32x128xbf16>, vector<8x128xf32> -> vector<8x128xf32>
    %131 = arith.addf %128, %130 : vector<8x128xf32>
    %cst_30 = arith.constant 5.000000e-01 : f32
    %132 = vector.broadcast %cst_30 : f32 to vector<8x128xf32>
    %133 = arith.mulf %132, %131 : vector<8x128xf32>
    %134 = math.tanh %133 : vector<8x128xf32>
    %cst_31 = arith.constant 1.000000e+00 : f32
    %135 = vector.broadcast %cst_31 : f32 to vector<8x128xf32>
    %136 = arith.addf %134, %135 : vector<8x128xf32>
    %cst_32 = arith.constant 5.000000e-01 : f32
    %137 = vector.broadcast %cst_32 : f32 to vector<8x128xf32>
    %138 = arith.mulf %137, %136 : vector<8x128xf32>
    %139 = math.tanh %131 : vector<8x128xf32>
    %140 = vector.extract_strided_slice %138 {offsets = [0, 0], sizes = [8, 32], strides = [1, 1]} : vector<8x128xf32> to vector<8x32xf32>
    %141 = vector.extract_strided_slice %138 {offsets = [0, 32], sizes = [8, 32], strides = [1, 1]} : vector<8x128xf32> to vector<8x32xf32>
    %142 = vector.extract_strided_slice %139 {offsets = [0, 64], sizes = [8, 32], strides = [1, 1]} : vector<8x128xf32> to vector<8x32xf32>
    %143 = vector.extract_strided_slice %138 {offsets = [0, 96], sizes = [8, 32], strides = [1, 1]} : vector<8x128xf32> to vector<8x32xf32>
    %144 = arith.mulf %141, %124 : vector<8x32xf32>
    %145 = arith.mulf %140, %142 : vector<8x32xf32>
    %146 = arith.addf %144, %145 : vector<8x32xf32>
    %147 = math.tanh %146 : vector<8x32xf32>
    %148 = arith.mulf %143, %147 : vector<8x32xf32>
    %149 = vector.extract_strided_slice %13 {offsets = [6, 0, 0], sizes = [1, 8, 128], strides = [1, 1, 1]} : vector<8x8x128xf32> to vector<1x8x128xf32>
    %150 = vector.shape_cast %149 : vector<1x8x128xf32> to vector<8x128xf32>
    %151 = arith.truncf %148 : vector<8x32xf32> to vector<8x32xbf16>
    %cst_33 = arith.constant dense<0.000000e+00> : vector<8x128xf32>
    %152 = tpu.matmul %151, %14, %cst_33 {dimension_numbers = #tpu.dot_dimension_numbers<[1], [0], [0], [1], [0, 0, 1, 1], [], []>} : vector<8x32xbf16>, vector<32x128xbf16>, vector<8x128xf32> -> vector<8x128xf32>
    %153 = arith.addf %150, %152 : vector<8x128xf32>
    %cst_34 = arith.constant 5.000000e-01 : f32
    %154 = vector.broadcast %cst_34 : f32 to vector<8x128xf32>
    %155 = arith.mulf %154, %153 : vector<8x128xf32>
    %156 = math.tanh %155 : vector<8x128xf32>
    %cst_35 = arith.constant 1.000000e+00 : f32
    %157 = vector.broadcast %cst_35 : f32 to vector<8x128xf32>
    %158 = arith.addf %156, %157 : vector<8x128xf32>
    %cst_36 = arith.constant 5.000000e-01 : f32
    %159 = vector.broadcast %cst_36 : f32 to vector<8x128xf32>
    %160 = arith.mulf %159, %158 : vector<8x128xf32>
    %161 = math.tanh %153 : vector<8x128xf32>
    %162 = vector.extract_strided_slice %160 {offsets = [0, 0], sizes = [8, 32], strides = [1, 1]} : vector<8x128xf32> to vector<8x32xf32>
    %163 = vector.extract_strided_slice %160 {offsets = [0, 32], sizes = [8, 32], strides = [1, 1]} : vector<8x128xf32> to vector<8x32xf32>
    %164 = vector.extract_strided_slice %161 {offsets = [0, 64], sizes = [8, 32], strides = [1, 1]} : vector<8x128xf32> to vector<8x32xf32>
    %165 = vector.extract_strided_slice %160 {offsets = [0, 96], sizes = [8, 32], strides = [1, 1]} : vector<8x128xf32> to vector<8x32xf32>
    %166 = arith.mulf %163, %146 : vector<8x32xf32>
    %167 = arith.mulf %162, %164 : vector<8x32xf32>
    %168 = arith.addf %166, %167 : vector<8x32xf32>
    %169 = math.tanh %168 : vector<8x32xf32>
    %170 = arith.mulf %165, %169 : vector<8x32xf32>
    %171 = vector.extract_strided_slice %13 {offsets = [7, 0, 0], sizes = [1, 8, 128], strides = [1, 1, 1]} : vector<8x8x128xf32> to vector<1x8x128xf32>
    %172 = vector.shape_cast %171 : vector<1x8x128xf32> to vector<8x128xf32>
    %173 = arith.truncf %170 : vector<8x32xf32> to vector<8x32xbf16>
    %cst_37 = arith.constant dense<0.000000e+00> : vector<8x128xf32>
    %174 = tpu.matmul %173, %14, %cst_37 {dimension_numbers = #tpu.dot_dimension_numbers<[1], [0], [0], [1], [0, 0, 1, 1], [], []>} : vector<8x32xbf16>, vector<32x128xbf16>, vector<8x128xf32> -> vector<8x128xf32>
    %175 = arith.addf %172, %174 : vector<8x128xf32>
    %cst_38 = arith.constant 5.000000e-01 : f32
    %176 = vector.broadcast %cst_38 : f32 to vector<8x128xf32>
    %177 = arith.mulf %176, %175 : vector<8x128xf32>
    %178 = math.tanh %177 : vector<8x128xf32>
    %cst_39 = arith.constant 1.000000e+00 : f32
    %179 = vector.broadcast %cst_39 : f32 to vector<8x128xf32>
    %180 = arith.addf %178, %179 : vector<8x128xf32>
    %cst_40 = arith.constant 5.000000e-01 : f32
    %181 = vector.broadcast %cst_40 : f32 to vector<8x128xf32>
    %182 = arith.mulf %181, %180 : vector<8x128xf32>
    %183 = math.tanh %175 : vector<8x128xf32>
    %184 = vector.extract_strided_slice %182 {offsets = [0, 0], sizes = [8, 32], strides = [1, 1]} : vector<8x128xf32> to vector<8x32xf32>
    %185 = vector.extract_strided_slice %182 {offsets = [0, 32], sizes = [8, 32], strides = [1, 1]} : vector<8x128xf32> to vector<8x32xf32>
    %186 = vector.extract_strided_slice %183 {offsets = [0, 64], sizes = [8, 32], strides = [1, 1]} : vector<8x128xf32> to vector<8x32xf32>
    %187 = vector.extract_strided_slice %182 {offsets = [0, 96], sizes = [8, 32], strides = [1, 1]} : vector<8x128xf32> to vector<8x32xf32>
    %188 = arith.mulf %185, %168 : vector<8x32xf32>
    %189 = arith.mulf %184, %186 : vector<8x32xf32>
    %190 = arith.addf %188, %189 : vector<8x32xf32>
    %191 = math.tanh %190 : vector<8x32xf32>
    %192 = arith.mulf %187, %191 : vector<8x32xf32>
    %193 = vector.extract_strided_slice %11 {offsets = [56, 128], sizes = [8, 128], strides = [1, 1]} : vector<64x256xf32> to vector<8x128xf32>
    %cst_41 = arith.constant 5.000000e-01 : f32
    %194 = vector.broadcast %cst_41 : f32 to vector<8x128xf32>
    %195 = arith.mulf %194, %193 : vector<8x128xf32>
    %196 = math.tanh %195 : vector<8x128xf32>
    %cst_42 = arith.constant 1.000000e+00 : f32
    %197 = vector.broadcast %cst_42 : f32 to vector<8x128xf32>
    %198 = arith.addf %196, %197 : vector<8x128xf32>
    %cst_43 = arith.constant 5.000000e-01 : f32
    %199 = vector.broadcast %cst_43 : f32 to vector<8x128xf32>
    %200 = arith.mulf %199, %198 : vector<8x128xf32>
    %201 = math.tanh %193 : vector<8x128xf32>
    %202 = vector.extract_strided_slice %200 {offsets = [0, 0], sizes = [8, 32], strides = [1, 1]} : vector<8x128xf32> to vector<8x32xf32>
    %203 = vector.extract_strided_slice %201 {offsets = [0, 64], sizes = [8, 32], strides = [1, 1]} : vector<8x128xf32> to vector<8x32xf32>
    %204 = arith.mulf %202, %203 : vector<8x32xf32>
    %205 = vector.extract_strided_slice %200 {offsets = [0, 96], sizes = [8, 32], strides = [1, 1]} : vector<8x128xf32> to vector<8x32xf32>
    %206 = math.tanh %204 : vector<8x32xf32>
    %207 = arith.mulf %205, %206 : vector<8x32xf32>
    %c0_44 = arith.constant 0 : index
    %c0_45 = arith.constant 0 : index
    %208 = vector.load %arg4[%c0_44, %c0_45] : memref<32x8xf32, #tpu.memory_space<vmem>>, vector<32x8xf32>
    %cst_46 = arith.constant dense<0.000000e+00> : vector<8x8xf32>
    %209 = tpu.matmul %192, %208, %cst_46 {dimension_numbers = #tpu.dot_dimension_numbers<[1], [0], [0], [1], [0, 0, 1, 1], [], []>} : vector<8x32xf32>, vector<32x8xf32>, vector<8x8xf32> -> vector<8x8xf32>
    %c0_47 = arith.constant 0 : index
    %c0_48 = arith.constant 0 : index
    %210 = vector.load %arg5[%c0_47, %c0_48] : memref<32x8xf32, #tpu.memory_space<vmem>>, vector<32x8xf32>
    %cst_49 = arith.constant dense<0.000000e+00> : vector<8x8xf32>
    %211 = tpu.matmul %207, %210, %cst_49 {dimension_numbers = #tpu.dot_dimension_numbers<[1], [0], [0], [1], [0, 0, 1, 1], [], []>} : vector<8x32xf32>, vector<32x8xf32>, vector<8x8xf32> -> vector<8x8xf32>
    %212 = arith.addf %209, %211 : vector<8x8xf32>
    %c0_50 = arith.constant 0 : index
    %c0_51 = arith.constant 0 : index
    %213 = vector.load %arg6[%c0_50, %c0_51] : memref<1x8xf32, #tpu.memory_space<vmem>>, vector<1x8xf32>
    %214 = vector.broadcast %213 : vector<1x8xf32> to vector<8x8xf32>
    %215 = arith.addf %212, %214 : vector<8x8xf32>
    %c0_52 = arith.constant 0 : index
    %c0_53 = arith.constant 0 : index
    %216 = vector.load %arg7[%c0_52, %c0_53] : memref<8x8xf32, #tpu.memory_space<vmem>>, vector<8x8xf32>
    tpu.vector_store %arg7[%c0_52, %c0_53], %215 {strides = array<i32>} : memref<8x8xf32, #tpu.memory_space<vmem>>, vector<8x8xf32>,
    return
  }
}

</mosaic_0001>

<llo_original>
// kernel: lstm_classifier_forward.1
$region0: #{lstm_classifier_forward.1}
  #allocation0 [shape = 'u32[]', space=smem, size = 0x4, offset = 0x4, fixed_abs, tag = 'smem constant byte address 0x4 - core index']
  #allocation1 [shape = 'u32[144,128]{1,0:T(1,128)}', space=vmem, size = 0x12000, scoped, tag = 'internal scratch']
  %s0 = inlined_call_operand.vmem [shape: s32[64,1], index: 0, kind: input, shape index: {}]
  %s1 = inlined_call_operand.vmem [shape: bf16[64,256], index: 1, kind: input, shape index: {}]
  %s2 = inlined_call_operand.vmem [shape: f32[1,256], index: 2, kind: input, shape index: {}]
  %s3 = inlined_call_operand.vmem [shape: bf16[32,128], index: 3, kind: input, shape index: {}]
  %s4 = inlined_call_operand.vmem [shape: f32[32,8], index: 4, kind: input, shape index: {}]
  %s5 = inlined_call_operand.vmem [shape: f32[32,8], index: 5, kind: input, shape index: {}]
  %s6 = inlined_call_operand.vmem [shape: f32[1,8], index: 6, kind: input, shape index: {}]
  %s7 = inlined_call_operand.vmem [shape: f32[8,8], index: 7, kind: output, shape index: {}]
  %s8 = sld [smem:[#allocation0]]
  $region38: #{lstm_classifier_forward.1} parent=0
    _
  %s10 = ssub.s32 1, %s8
  %s11 = scalar_select 0, %s10, %s8
  // Predicated region
  $region2: #{lstm_classifier_forward.1} parent=0 // pred_check
    _
  $region3: #{lstm_classifier_forward.1} parent=0 // pred_check_branch
    %13 = sbr.rel (0) target = $region5
  $region4: #{lstm_classifier_forward.1} parent=0 // pred_region
    _
  $region5: #{lstm_classifier_forward.1} parent=0 // pred_fallthru
    _
  // Predicated region
  $region6: #{lstm_classifier_forward.1} parent=0 // pred_check
    _
  $region7: #{lstm_classifier_forward.1} parent=0 // pred_check_branch
    %15 = sbr.rel (0) target = $region9
  $region8: #{lstm_classifier_forward.1} parent=0 // pred_region
    _
  $region9: #{lstm_classifier_forward.1} parent=0 // pred_fallthru
    _
  // Predicated region
  $region10: #{lstm_classifier_forward.1} parent=0 // pred_check
    _
  $region11: #{lstm_classifier_forward.1} parent=0 // pred_check_branch
    %17 = sbr.rel (0) target = $region13
  $region12: #{lstm_classifier_forward.1} parent=0 // pred_region
    _
  $region13: #{lstm_classifier_forward.1} parent=0 // pred_fallthru
    _
  // Predicated region
  $region14: #{lstm_classifier_forward.1} parent=0 // pred_check
    _
  $region15: #{lstm_classifier_forward.1} parent=0 // pred_check_branch
    %19 = sbr.rel (0) target = $region17
  $region16: #{lstm_classifier_forward.1} parent=0 // pred_region
    _
  $region17: #{lstm_classifier_forward.1} parent=0 // pred_fallthru
    _
  // Predicated region
  $region18: #{lstm_classifier_forward.1} parent=0 // pred_check
    _
  $region19: #{lstm_classifier_forward.1} parent=0 // pred_check_branch
    %21 = sbr.rel (0) target = $region21
  $region20: #{lstm_classifier_forward.1} parent=0 // pred_region
    _
  $region21: #{lstm_classifier_forward.1} parent=0 // pred_fallthru
    _
  // Predicated region
  $region22: #{lstm_classifier_forward.1} parent=0 // pred_check
    _
  $region23: #{lstm_classifier_forward.1} parent=0 // pred_check_branch
    %23 = sbr.rel (0) target = $region25
  $region24: #{lstm_classifier_forward.1} parent=0 // pred_region
    _
  $region25: #{lstm_classifier_forward.1} parent=0 // pred_fallthru
    _
  // Predicated region
  $region26: #{lstm_classifier_forward.1} parent=0 // pred_check
    _
  $region27: #{lstm_classifier_forward.1} parent=0 // pred_check_branch
    %25 = sbr.rel (0) target = $region29
  $region28: #{lstm_classifier_forward.1} parent=0 // pred_region
    _
  $region29: #{lstm_classifier_forward.1} parent=0 // pred_fallthru
    _
  %v27 = vld [vmem:[%s0] sm:$0xff]
  %v28 = vld [vmem:[%s0 + $0x8] sm:$0xff]
  %v29 = vld [vmem:[%s0 + $0x10] sm:$0xff]
  %v30 = vld [vmem:[%s0 + $0x18] sm:$0xff]
  %v31 = vld [vmem:[%s0 + $0x20] sm:$0xff]
  %v32 = vld [vmem:[%s0 + $0x28] sm:$0xff]
  %v33 = vld [vmem:[%s0 + $0x30] sm:$0xff]
  %v34 = vld [vmem:[%s0 + $0x38] sm:$0xff]
  %v35 = vlaneseq
  %v36 = vand.u32 %v35, 127
  %37 = vset.pattern.permute.xlu0 0
  %38 = vperm.xlu0 %37, %v27
  %v39 = vpop.permute.xlu0 %38
  %40 = vset.pattern.permute.xlu0 0
  %41 = vperm.xlu0 %40, %v28
  %v42 = vpop.permute.xlu0 %41
  %43 = vset.pattern.permute.xlu0 0
  %44 = vperm.xlu0 %43, %v29
  %v45 = vpop.permute.xlu0 %44
  %46 = vset.pattern.permute.xlu0 0
  %47 = vperm.xlu0 %46, %v30
  %v48 = vpop.permute.xlu0 %47
  %49 = vset.pattern.permute.xlu0 0
  %50 = vperm.xlu0 %49, %v31
  %v51 = vpop.permute.xlu0 %50
  %52 = vset.pattern.permute.xlu0 0
  %53 = vperm.xlu0 %52, %v32
  %v54 = vpop.permute.xlu0 %53
  %55 = vset.pattern.permute.xlu0 0
  %56 = vperm.xlu0 %55, %v33
  %v57 = vpop.permute.xlu0 %56
  %58 = vset.pattern.permute.xlu0 0
  %59 = vperm.xlu0 %58, %v34
  %v60 = vpop.permute.xlu0 %59
  %vm61 = vcmp.eq.s32.totalorder %v39, %v36
  %vm62 = vcmp.eq.s32.totalorder %v42, %v36
  %vm63 = vcmp.eq.s32.totalorder %v45, %v36
  %vm64 = vcmp.eq.s32.totalorder %v48, %v36
  %vm65 = vcmp.eq.s32.totalorder %v51, %v36
  %vm66 = vcmp.eq.s32.totalorder %v54, %v36
  %vm67 = vcmp.eq.s32.totalorder %v57, %v36
  %vm68 = vcmp.eq.s32.totalorder %v60, %v36
  %v69 = vsel %vm61, 1, 0
  %v70 = vsel %vm62, 1, 0
  %v71 = vsel %vm63, 1, 0
  %v72 = vsel %vm64, 1, 0
  %v73 = vsel %vm65, 1, 0
  %v74 = vsel %vm66, 1, 0
  %v75 = vsel %vm67, 1, 0
  %v76 = vsel %vm68, 1, 0
  %v77 = vcvt.s32.f32 %v69
  %v78 = vcvt.s32.f32 %v70
  %v79 = vcvt.s32.f32 %v71
  %v80 = vcvt.s32.f32 %v72
  %v81 = vcvt.s32.f32 %v73
  %v82 = vcvt.s32.f32 %v74
  %v83 = vcvt.s32.f32 %v75
  %v84 = vcvt.s32.f32 %v76
  %v85 = vpack.c.bf16 %v78, %v77
  %v86 = vpack.c.bf16 %v80, %v79
  %v87 = vpack.c.bf16 %v82, %v81
  %v88 = vpack.c.bf16 %v84, %v83
  %v89 = vld [vmem:[%s1] sm:$0xff]
  %v90 = vld [vmem:[%s1 + $0x8] sm:$0xff]
  %v91 = vld [vmem:[%s1 + $0x10] sm:$0xff]
  %v92 = vld [vmem:[%s1 + $0x18] sm:$0xff]
  %v93 = vld [vmem:[%s1 + $0x20] sm:$0xff]
  %v94 = vld [vmem:[%s1 + $0x28] sm:$0xff]
  %v95 = vld [vmem:[%s1 + $0x30] sm:$0xff]
  %v96 = vld [vmem:[%s1 + $0x38] sm:$0xff]
  %v97 = vld [vmem:[%s2] sm:$0x3]
  %v99 = vlaneseq
  %v100 = vshrl.u32 %v99, 7
  %v101 = vsub.s32 0, %v100
  %v102 = vrot.slane %v97, %v101
  %v103 = vlaneseq
  %v104 = vshrl.u32 %v103, 7
  %v105 = vsub.s32 1, %v104
  %v106 = vrot.slane %v97, %v105
  %v117 = vunpack.c.l.b16 %v89
  %v118 = vunpack.c.h.b16 %v89
  %v119 = vunpack.c.l.b16 %v90
  %v120 = vunpack.c.h.b16 %v90
  %v121 = vunpack.c.l.b16 %v91
  %v122 = vunpack.c.h.b16 %v91
  %v123 = vunpack.c.l.b16 %v92
  %v124 = vunpack.c.h.b16 %v92
  %v125 = vunpack.c.l.b16 %v93
  %v126 = vunpack.c.h.b16 %v93
  %v127 = vunpack.c.l.b16 %v94
  %v128 = vunpack.c.h.b16 %v94
  %v129 = vunpack.c.l.b16 %v95
  %v130 = vunpack.c.h.b16 %v95
  %v131 = vunpack.c.l.b16 %v96
  %v132 = vunpack.c.h.b16 %v96
  %v133 = vpack.c.b16 %v119, %v117
  %v134 = vpack.c.b16 %v120, %v118
  %v135 = vpack.c.b16 %v123, %v121
  %v136 = vpack.c.b16 %v124, %v122
  %v137 = vpack.c.b16 %v127, %v125
  %v138 = vpack.c.b16 %v128, %v126
  %v139 = vpack.c.b16 %v131, %v129
  %v140 = vpack.c.b16 %v132, %v130
  %vm149 = vcmask 523264
  %v151 = vsel %vm149, %v85, 0
  %v154 = vsel %vm149, %v86, 0
  %v157 = vsel %vm149, %v87, 0
  %v160 = vsel %vm149, %v88, 0
  %162 = vmatprep.subr.bf16.mxu0 %v134
  %163 = vmatpush1.bf16.msra.mxu0 %v133
  %164 = vmatprep.subr.bf16.mxu0 %v136
  %165 = vmatpush1.bf16.msra.mxu0 %v135
  %166 = vmatprep.subr.bf16.mxu0 %v138
  %167 = vmatpush1.bf16.msra.mxu0 %v137
  %168 = vmatprep.subr.bf16.mxu0 %v140
  %169 = vmatpush1.bf16.msra.mxu0 %v139
  %170 = vmatprep.subr.bf16.mxu0 0
  %171 = vmatpush1.bf16.msra.mxu0 0
  %172 = vmatprep.subr.bf16.mxu0 0
  %173 = vmatpush1.bf16.msra.mxu0 0
  %174 = vmatprep.subr.bf16.mxu0 0
  %175 = vmatpush1.bf16.msra.mxu0 0
  %176 = vmatprep.subr.bf16.mxu0 0
  %177 = vmatpush1.bf16.msra.mxu0 0
  %178 = vmatprep.subr.bf16.mxu0 0
  %179 = vmatpush1.bf16.msra.mxu0 0
  %180 = vmatprep.subr.bf16.mxu0 0
  %181 = vmatpush1.bf16.msra.mxu0 0
  %182 = vmatprep.subr.bf16.mxu0 0
  %183 = vmatpush1.bf16.msra.mxu0 0
  %184 = vmatprep.subr.bf16.mxu0 0
  %185 = vmatpush1.bf16.msra.mxu0 0
  %186 = vmatprep.subr.bf16.mxu0 0
  %187 = vmatpush1.bf16.msra.mxu0 0
  %188 = vmatprep.subr.bf16.mxu0 0
  %189 = vmatpush1.bf16.msra.mxu0 0
  %190 = vmatprep.subr.bf16.mxu0 0
  %191 = vmatpush1.bf16.msra.mxu0 0
  %192 = vmatprep.subr.bf16.mxu0 0
  %193 = vmatpush1.bf16.msra.mxu0 0
  %194 = vmatprep.mubr.bf16.mxu0 0
  %195 = vmatmul.mubr.bf16.gmra.mrb[0].mxu0 %v151
  %v196 = vpop.f32.mrb[0].mxu0
  %v197 = vadd.f32 %v102, %v196
  %v198 = vpop.f32.mrb[0].mxu0
  %v199 = vpop.f32.mrb[0].mxu0
  %v200 = vadd.f32 %v102, %v199
  %v201 = vpop.f32.mrb[0].mxu0
  %202 = vmatprep.mubr.bf16.mxu0 0
  %203 = vmatmul.mubr.bf16.gmra.mrb[0].mxu0 %v154
  %v204 = vpop.f32.mrb[0].mxu0
  %v205 = vadd.f32 %v102, %v204
  %v206 = vpop.f32.mrb[0].mxu0
  %v207 = vpop.f32.mrb[0].mxu0
  %v208 = vadd.f32 %v102, %v207
  %v209 = vpop.f32.mrb[0].mxu0
  %210 = vmatprep.mubr.bf16.mxu0 0
  %211 = vmatmul.mubr.bf16.gmra.mrb[0].mxu0 %v157
  %v212 = vpop.f32.mrb[0].mxu0
  %v213 = vadd.f32 %v102, %v212
  %v214 = vpop.f32.mrb[0].mxu0
  %v215 = vpop.f32.mrb[0].mxu0
  %v216 = vadd.f32 %v102, %v215
  %v217 = vpop.f32.mrb[0].mxu0
  %218 = vmatprep.mubr.bf16.mxu0 0
  %219 = vmatmul.mubr.bf16.gmra.mrb[0].mxu0 %v160
  %v220 = vpop.f32.mrb[0].mxu0
  %v221 = vadd.f32 %v102, %v220
  %v222 = vpop.f32.mrb[0].mxu0
  %v223 = vpop.f32.mrb[0].mxu0
  %v224 = vadd.f32 %v102, %v223
  %v225 = vpop.f32.mrb[0].mxu0
  %v226 = vadd.f32 %v106, %v225
  %227 = vdwg.mxu0
  %v228 = vld [vmem:[%s3] sm:$0xf]
  %v229 = vld [vmem:[%s3 + $0x4] sm:$0xf]
  %v230 = vld [vmem:[%s3 + $0x8] sm:$0xf]
  %v231 = vld [vmem:[%s3 + $0xc] sm:$0xf]
  %v236 = vunpack.c.l.b16 %v228
  %v237 = vunpack.c.l.b16 %v229
  %v238 = vunpack.c.l.b16 %v230
  %v239 = vunpack.c.l.b16 %v231
  %v240 = vpack.c.b16 %v237, %v236
  %v241 = vpack.c.b16 %v239, %v238
  %vm244 = vcmask 261120
  %v246 = vsel %vm244, 0, 0
  %248 = vmatprep.subr.bf16.mxu0 0
  %249 = vmatpush1.bf16.msra.mxu0 %v240
  %250 = vmatprep.subr.bf16.mxu0 0
  %251 = vmatpush1.bf16.msra.mxu0 %v241
  %252 = vmatprep.subr.bf16.mxu0 0
  %253 = vmatpush1.bf16.msra.mxu0 0
  %254 = vmatprep.subr.bf16.mxu0 0
  %255 = vmatpush1.bf16.msra.mxu0 0
  %256 = vmatprep.subr.bf16.mxu0 0
  %257 = vmatpush1.bf16.msra.mxu0 0
  %258 = vmatprep.subr.bf16.mxu0 0
  %259 = vmatpush1.bf16.msra.mxu0 0
  %260 = vmatprep.subr.bf16.mxu0 0
  %261 = vmatpush1.bf16.msra.mxu0 0
  %262 = vmatprep.subr.bf16.mxu0 0
  %263 = vmatpush1.bf16.msra.mxu0 0
  %264 = vmatprep.subr.bf16.mxu0 0
  %265 = vmatpush1.bf16.msra.mxu0 0
  %266 = vmatprep.subr.bf16.mxu0 0
  %267 = vmatpush1.bf16.msra.mxu0 0
  %268 = vmatprep.subr.bf16.mxu0 0
  %269 = vmatpush1.bf16.msra.mxu0 0
  %270 = vmatprep.subr.bf16.mxu0 0
  %271 = vmatpush1.bf16.msra.mxu0 0
  %272 = vmatprep.subr.bf16.mxu0 0
  %273 = vmatpush1.bf16.msra.mxu0 0
  %274 = vmatprep.subr.bf16.mxu0 0
  %275 = vmatpush1.bf16.msra.mxu0 0
  %276 = vmatprep.subr.bf16.mxu0 0
  %277 = vmatpush1.bf16.msra.mxu0 0
  %278 = vmatprep.subr.bf16.mxu0 0
  %279 = vmatpush1.bf16.msra.mxu0 0
  %280 = vmatprep.mubr.bf16.mxu0 0
  %281 = vmatmul.mubr.bf16.gmra.mrb[0].mxu0 %v246
  %v282 = vpop.f32.mrb[0].mxu0
  %v283 = vadd.f32 0.0, %v282
  %v284 = vpop.f32.mrb[0].mxu0
  %v285 = vpop.f32.mrb[0].mxu0
  %v286 = vpop.f32.mrb[0].mxu0
  %287 = vdwg.mxu0
  %v288 = vadd.f32 %v197, %v283
  %v289 = vmul.f32 %v288, 0.5
  %v290 = vtanh.pop %v289
  %v291 = vadd.f32 %v290, 1.0
  %v292 = vmul.f32 %v291, 0.5
  %v293 = vtanh.pop %v288
  %v294 = vmul.f32 %v292, 0.0
  %296 = vrot.lane.b32.xlu0 %v293, 64
  %v297 = vpop.permute.xlu0 %296
  %v299 = vmul.f32 %v292, %v297
  %301 = vrot.lane.b32.xlu0 %v299, 32
  %v302 = vpop.permute.xlu0 %301
  %v304 = vadd.f32 %v294, %v302
  %v305 = vtanh.pop %v304
  %307 = vrot.lane.b32.xlu0 %v305, 64
  %v308 = vpop.permute.xlu0 %307
  %v310 = vmul.f32 %v292, %v308
  %v311 = vpack.c.bf16 %v310, %v310
  %313 = vrot.lane.b32.xlu0 %v311, 32
  %v314 = vpop.permute.xlu0 %313
  %v316 = vsel %vm244, %v314, 0
  %318 = vmatprep.subr.bf16.mxu0 0
  %319 = vmatpush1.bf16.msra.mxu0 %v240
  %320 = vmatprep.subr.bf16.mxu0 0
  %321 = vmatpush1.bf16.msra.mxu0 %v241
  %322 = vmatprep.subr.bf16.mxu0 0
  %323 = vmatpush1.bf16.msra.mxu0 0
  %324 = vmatprep.subr.bf16.mxu0 0
  %325 = vmatpush1.bf16.msra.mxu0 0
  %326 = vmatprep.subr.bf16.mxu0 0
  %327 = vmatpush1.bf16.msra.mxu0 0
  %328 = vmatprep.subr.bf16.mxu0 0
  %329 = vmatpush1.bf16.msra.mxu0 0
  %330 = vmatprep.subr.bf16.mxu0 0
  %331 = vmatpush1.bf16.msra.mxu0 0
  %332 = vmatprep.subr.bf16.mxu0 0
  %333 = vmatpush1.bf16.msra.mxu0 0
  %334 = vmatprep.subr.bf16.mxu0 0
  %335 = vmatpush1.bf16.msra.mxu0 0
  %336 = vmatprep.subr.bf16.mxu0 0
  %337 = vmatpush1.bf16.msra.mxu0 0
  %338 = vmatprep.subr.bf16.mxu0 0
  %339 = vmatpush1.bf16.msra.mxu0 0
  %340 = vmatprep.subr.bf16.mxu0 0
  %341 = vmatpush1.bf16.msra.mxu0 0
  %342 = vmatprep.subr.bf16.mxu0 0
  %343 = vmatpush1.bf16.msra.mxu0 0
  %344 = vmatprep.subr.bf16.mxu0 0
  %345 = vmatpush1.bf16.msra.mxu0 0
  %346 = vmatprep.subr.bf16.mxu0 0
  %347 = vmatpush1.bf16.msra.mxu0 0
  %348 = vmatprep.subr.bf16.mxu0 0
  %349 = vmatpush1.bf16.msra.mxu0 0
  %350 = vmatprep.mubr.bf16.mxu0 0
  %351 = vmatmul.mubr.bf16.gmra.mrb[0].mxu0 %v316
  %v352 = vpop.f32.mrb[0].mxu0
  %v353 = vadd.f32 0.0, %v352
  %v354 = vpop.f32.mrb[0].mxu0
  %v355 = vpop.f32.mrb[0].mxu0
  %v356 = vpop.f32.mrb[0].mxu0
  %357 = vdwg.mxu0
  %v358 = vadd.f32 %v200, %v353
  %v359 = vmul.f32 %v358, 0.5
  %v360 = vtanh.pop %v359
  %v361 = vadd.f32 %v360, 1.0
  %v362 = vmul.f32 %v361, 0.5
  %v363 = vtanh.pop %v358
  %v364 = vmul.f32 %v362, %v304
  %366 = vrot.lane.b32.xlu0 %v363, 64
  %v367 = vpop.permute.xlu0 %366
  %v369 = vmul.f32 %v362, %v367
  %371 = vrot.lane.b32.xlu0 %v369, 32
  %v372 = vpop.permute.xlu0 %371
  %v374 = vadd.f32 %v364, %v372
  %v375 = vtanh.pop %v374
  %377 = vrot.lane.b32.xlu0 %v375, 64
  %v378 = vpop.permute.xlu0 %377
  %v380 = vmul.f32 %v362, %v378
  %v381 = vpack.c.bf16 %v380, %v380
  %383 = vrot.lane.b32.xlu0 %v381, 32
  %v384 = vpop.permute.xlu0 %383
  %v386 = vsel %vm244, %v384, 0
  %388 = vmatprep.subr.bf16.mxu0 0
  %389 = vmatpush1.bf16.msra.mxu0 %v240
  %390 = vmatprep.subr.bf16.mxu0 0
  %391 = vmatpush1.bf16.msra.mxu0 %v241
  %392 = vmatprep.subr.bf16.mxu0 0
  %393 = vmatpush1.bf16.msra.mxu0 0
  %394 = vmatprep.subr.bf16.mxu0 0
  %395 = vmatpush1.bf16.msra.mxu0 0
  %396 = vmatprep.subr.bf16.mxu0 0
  %397 = vmatpush1.bf16.msra.mxu0 0
  %398 = vmatprep.subr.bf16.mxu0 0
  %399 = vmatpush1.bf16.msra.mxu0 0
  %400 = vmatprep.subr.bf16.mxu0 0
  %401 = vmatpush1.bf16.msra.mxu0 0
  %402 = vmatprep.subr.bf16.mxu0 0
  %403 = vmatpush1.bf16.msra.mxu0 0
  %404 = vmatprep.subr.bf16.mxu0 0
  %405 = vmatpush1.bf16.msra.mxu0 0
  %406 = vmatprep.subr.bf16.mxu0 0
  %407 = vmatpush1.bf16.msra.mxu0 0
  %408 = vmatprep.subr.bf16.mxu0 0
  %409 = vmatpush1.bf16.msra.mxu0 0
  %410 = vmatprep.subr.bf16.mxu0 0
  %411 = vmatpush1.bf16.msra.mxu0 0
  %412 = vmatprep.subr.bf16.mxu0 0
  %413 = vmatpush1.bf16.msra.mxu0 0
  %414 = vmatprep.subr.bf16.mxu0 0
  %415 = vmatpush1.bf16.msra.mxu0 0
  %416 = vmatprep.subr.bf16.mxu0 0
  %417 = vmatpush1.bf16.msra.mxu0 0
  %418 = vmatprep.subr.bf16.mxu0 0
  %419 = vmatpush1.bf16.msra.mxu0 0
  %420 = vmatprep.mubr.bf16.mxu0 0
  %421 = vmatmul.mubr.bf16.gmra.mrb[0].mxu0 %v386
  %v422 = vpop.f32.mrb[0].mxu0
  %v423 = vadd.f32 0.0, %v422
  %v424 = vpop.f32.mrb[0].mxu0
  %v425 = vpop.f32.mrb[0].mxu0
  %v426 = vpop.f32.mrb[0].mxu0
  %427 = vdwg.mxu0
  %v428 = vadd.f32 %v205, %v423
  %v429 = vmul.f32 %v428, 0.5
  %v430 = vtanh.pop %v429
  %v431 = vadd.f32 %v430, 1.0
  %v432 = vmul.f32 %v431, 0.5
  %v433 = vtanh.pop %v428
  %v434 = vmul.f32 %v432, %v374
  %436 = vrot.lane.b32.xlu0 %v433, 64
  %v437 = vpop.permute.xlu0 %436
  %v439 = vmul.f32 %v432, %v437
  %441 = vrot.lane.b32.xlu0 %v439, 32
  %v442 = vpop.permute.xlu0 %441
  %v444 = vadd.f32 %v434, %v442
  %v445 = vtanh.pop %v444
  %447 = vrot.lane.b32.xlu0 %v445, 64
  %v448 = vpop.permute.xlu0 %447
  %v450 = vmul.f32 %v432, %v448
  %v451 = vpack.c.bf16 %v450, %v450
  %453 = vrot.lane.b32.xlu0 %v451, 32
  %v454 = vpop.permute.xlu0 %453
  %v456 = vsel %vm244, %v454, 0
  %458 = vmatprep.subr.bf16.mxu0 0
  %459 = vmatpush1.bf16.msra.mxu0 %v240
  %460 = vmatprep.subr.bf16.mxu0 0
  %461 = vmatpush1.bf16.msra.mxu0 %v241
  %462 = vmatprep.subr.bf16.mxu0 0
  %463 = vmatpush1.bf16.msra.mxu0 0
  %464 = vmatprep.subr.bf16.mxu0 0
  %465 = vmatpush1.bf16.msra.mxu0 0
  %466 = vmatprep.subr.bf16.mxu0 0
  %467 = vmatpush1.bf16.msra.mxu0 0
  %468 = vmatprep.subr.bf16.mxu0 0
  %469 = vmatpush1.bf16.msra.mxu0 0
  %470 = vmatprep.subr.bf16.mxu0 0
  %471 = vmatpush1.bf16.msra.mxu0 0
  %472 = vmatprep.subr.bf16.mxu0 0
  %473 = vmatpush1.bf16.msra.mxu0 0
  %474 = vmatprep.subr.bf16.mxu0 0
  %475 = vmatpush1.bf16.msra.mxu0 0
  %476 = vmatprep.subr.bf16.mxu0 0
  %477 = vmatpush1.bf16.msra.mxu0 0
  %478 = vmatprep.subr.bf16.mxu0 0
  %479 = vmatpush1.bf16.msra.mxu0 0
  %480 = vmatprep.subr.bf16.mxu0 0
  %481 = vmatpush1.bf16.msra.mxu0 0
  %482 = vmatprep.subr.bf16.mxu0 0
  %483 = vmatpush1.bf16.msra.mxu0 0
  %484 = vmatprep.subr.bf16.mxu0 0
  %485 = vmatpush1.bf16.msra.mxu0 0
  %486 = vmatprep.subr.bf16.mxu0 0
  %487 = vmatpush1.bf16.msra.mxu0 0
  %488 = vmatprep.subr.bf16.mxu0 0
  %489 = vmatpush1.bf16.msra.mxu0 0
  %490 = vmatprep.mubr.bf16.mxu0 0
  %491 = vmatmul.mubr.bf16.gmra.mrb[0].mxu0 %v456
  %v492 = vpop.f32.mrb[0].mxu0
  %v493 = vadd.f32 0.0, %v492
  %v494 = vpop.f32.mrb[0].mxu0
  %v495 = vpop.f32.mrb[0].mxu0
  %v496 = vpop.f32.mrb[0].mxu0
  %497 = vdwg.mxu0
  %v498 = vadd.f32 %v208, %v493
  %v499 = vmul.f32 %v498, 0.5
  %v500 = vtanh.pop %v499
  %v501 = vadd.f32 %v500, 1.0
  %v502 = vmul.f32 %v501, 0.5
  %v503 = vtanh.pop %v498
  %v504 = vmul.f32 %v502, %v444
  %506 = vrot.lane.b32.xlu0 %v503, 64
  %v507 = vpop.permute.xlu0 %506
  %v509 = vmul.f32 %v502, %v507
  %511 = vrot.lane.b32.xlu0 %v509, 32
  %v512 = vpop.permute.xlu0 %511
  %v514 = vadd.f32 %v504, %v512
  %v515 = vtanh.pop %v514
  %517 = vrot.lane.b32.xlu0 %v515, 64
  %v518 = vpop.permute.xlu0 %517
  %v520 = vmul.f32 %v502, %v518
  %v521 = vpack.c.bf16 %v520, %v520
  %523 = vrot.lane.b32.xlu0 %v521, 32
  %v524 = vpop.permute.xlu0 %523
  %v526 = vsel %vm244, %v524, 0
  %528 = vmatprep.subr.bf16.mxu0 0
  %529 = vmatpush1.bf16.msra.mxu0 %v240
  %530 = vmatprep.subr.bf16.mxu0 0
  %531 = vmatpush1.bf16.msra.mxu0 %v241
  %532 = vmatprep.subr.bf16.mxu0 0
  %533 = vmatpush1.bf16.msra.mxu0 0
  %534 = vmatprep.subr.bf16.mxu0 0
  %535 = vmatpush1.bf16.msra.mxu0 0
  %536 = vmatprep.subr.bf16.mxu0 0
  %537 = vmatpush1.bf16.msra.mxu0 0
  %538 = vmatprep.subr.bf16.mxu0 0
  %539 = vmatpush1.bf16.msra.mxu0 0
  %540 = vmatprep.subr.bf16.mxu0 0
  %541 = vmatpush1.bf16.msra.mxu0 0
  %542 = vmatprep.subr.bf16.mxu0 0
  %543 = vmatpush1.bf16.msra.mxu0 0
  %544 = vmatprep.subr.bf16.mxu0 0
  %545 = vmatpush1.bf16.msra.mxu0 0
  %546 = vmatprep.subr.bf16.mxu0 0
  %547 = vmatpush1.bf16.msra.mxu0 0
  %548 = vmatprep.subr.bf16.mxu0 0
  %549 = vmatpush1.bf16.msra.mxu0 0
  %550 = vmatprep.subr.bf16.mxu0 0
  %551 = vmatpush1.bf16.msra.mxu0 0
  %552 = vmatprep.subr.bf16.mxu0 0
  %553 = vmatpush1.bf16.msra.mxu0 0
  %554 = vmatprep.subr.bf16.mxu0 0
  %555 = vmatpush1.bf16.msra.mxu0 0
  %556 = vmatprep.subr.bf16.mxu0 0
  %557 = vmatpush1.bf16.msra.mxu0 0
  %558 = vmatprep.subr.bf16.mxu0 0
  %559 = vmatpush1.bf16.msra.mxu0 0
  %560 = vmatprep.mubr.bf16.mxu0 0
  %561 = vmatmul.mubr.bf16.gmra.mrb[0].mxu0 %v526
  %v562 = vpop.f32.mrb[0].mxu0
  %v563 = vadd.f32 0.0, %v562
  %v564 = vpop.f32.mrb[0].mxu0
  %v565 = vpop.f32.mrb[0].mxu0
  %v566 = vpop.f32.mrb[0].mxu0
  %567 = vdwg.mxu0
  %v568 = vadd.f32 %v213, %v563
  %v569 = vmul.f32 %v568, 0.5
  %v570 = vtanh.pop %v569
  %v571 = vadd.f32 %v570, 1.0
  %v572 = vmul.f32 %v571, 0.5
  %v573 = vtanh.pop %v568
  %v574 = vmul.f32 %v572, %v514
  %576 = vrot.lane.b32.xlu0 %v573, 64
  %v577 = vpop.permute.xlu0 %576
  %v579 = vmul.f32 %v572, %v577
  %581 = vrot.lane.b32.xlu0 %v579, 32
  %v582 = vpop.permute.xlu0 %581
  %v584 = vadd.f32 %v574, %v582
  %v585 = vtanh.pop %v584
  %587 = vrot.lane.b32.xlu0 %v585, 64
  %v588 = vpop.permute.xlu0 %587
  %v590 = vmul.f32 %v572, %v588
  %v591 = vpack.c.bf16 %v590, %v590
  %593 = vrot.lane.b32.xlu0 %v591, 32
  %v594 = vpop.permute.xlu0 %593
  %v596 = vsel %vm244, %v594, 0
  %598 = vmatprep.subr.bf16.mxu0 0
  %599 = vmatpush1.bf16.msra.mxu0 %v240
  %600 = vmatprep.subr.bf16.mxu0 0
  %601 = vmatpush1.bf16.msra.mxu0 %v241
  %602 = vmatprep.subr.bf16.mxu0 0
  %603 = vmatpush1.bf16.msra.mxu0 0
  %604 = vmatprep.subr.bf16.mxu0 0
  %605 = vmatpush1.bf16.msra.mxu0 0
  %606 = vmatprep.subr.bf16.mxu0 0
  %607 = vmatpush1.bf16.msra.mxu0 0
  %608 = vmatprep.subr.bf16.mxu0 0
  %609 = vmatpush1.bf16.msra.mxu0 0
  %610 = vmatprep.subr.bf16.mxu0 0
  %611 = vmatpush1.bf16.msra.mxu0 0
  %612 = vmatprep.subr.bf16.mxu0 0
  %613 = vmatpush1.bf16.msra.mxu0 0
  %614 = vmatprep.subr.bf16.mxu0 0
  %615 = vmatpush1.bf16.msra.mxu0 0
  %616 = vmatprep.subr.bf16.mxu0 0
  %617 = vmatpush1.bf16.msra.mxu0 0
  %618 = vmatprep.subr.bf16.mxu0 0
  %619 = vmatpush1.bf16.msra.mxu0 0
  %620 = vmatprep.subr.bf16.mxu0 0
  %621 = vmatpush1.bf16.msra.mxu0 0
  %622 = vmatprep.subr.bf16.mxu0 0
  %623 = vmatpush1.bf16.msra.mxu0 0
  %624 = vmatprep.subr.bf16.mxu0 0
  %625 = vmatpush1.bf16.msra.mxu0 0
  %626 = vmatprep.subr.bf16.mxu0 0
  %627 = vmatpush1.bf16.msra.mxu0 0
  %628 = vmatprep.subr.bf16.mxu0 0
  %629 = vmatpush1.bf16.msra.mxu0 0
  %630 = vmatprep.mubr.bf16.mxu0 0
  %631 = vmatmul.mubr.bf16.gmra.mrb[0].mxu0 %v596
  %v632 = vpop.f32.mrb[0].mxu0
  %v633 = vadd.f32 0.0, %v632
  %v634 = vpop.f32.mrb[0].mxu0
  %v635 = vpop.f32.mrb[0].mxu0
  %v636 = vpop.f32.mrb[0].mxu0
  %637 = vdwg.mxu0
  %v638 = vadd.f32 %v216, %v633
  %v639 = vmul.f32 %v638, 0.5
  %v640 = vtanh.pop %v639
  %v641 = vadd.f32 %v640, 1.0
  %v642 = vmul.f32 %v641, 0.5
  %v643 = vtanh.pop %v638
  %v644 = vmul.f32 %v642, %v584
  %646 = vrot.lane.b32.xlu0 %v643, 64
  %v647 = vpop.permute.xlu0 %646
  %v649 = vmul.f32 %v642, %v647
  %651 = vrot.lane.b32.xlu0 %v649, 32
  %v652 = vpop.permute.xlu0 %651
  %v654 = vadd.f32 %v644, %v652
  %v655 = vtanh.pop %v654
  %657 = vrot.lane.b32.xlu0 %v655, 64
  %v658 = vpop.permute.xlu0 %657
  %v660 = vmul.f32 %v642, %v658
  %v661 = vpack.c.bf16 %v660, %v660
  %663 = vrot.lane.b32.xlu0 %v661, 32
  %v664 = vpop.permute.xlu0 %663
  %v666 = vsel %vm244, %v664, 0
  %668 = vmatprep.subr.bf16.mxu0 0
  %669 = vmatpush1.bf16.msra.mxu0 %v240
  %670 = vmatprep.subr.bf16.mxu0 0
  %671 = vmatpush1.bf16.msra.mxu0 %v241
  %672 = vmatprep.subr.bf16.mxu0 0
  %673 = vmatpush1.bf16.msra.mxu0 0
  %674 = vmatprep.subr.bf16.mxu0 0
  %675 = vmatpush1.bf16.msra.mxu0 0
  %676 = vmatprep.subr.bf16.mxu0 0
  %677 = vmatpush1.bf16.msra.mxu0 0
  %678 = vmatprep.subr.bf16.mxu0 0
  %679 = vmatpush1.bf16.msra.mxu0 0
  %680 = vmatprep.subr.bf16.mxu0 0
  %681 = vmatpush1.bf16.msra.mxu0 0
  %682 = vmatprep.subr.bf16.mxu0 0
  %683 = vmatpush1.bf16.msra.mxu0 0
  %684 = vmatprep.subr.bf16.mxu0 0
  %685 = vmatpush1.bf16.msra.mxu0 0
  %686 = vmatprep.subr.bf16.mxu0 0
  %687 = vmatpush1.bf16.msra.mxu0 0
  %688 = vmatprep.subr.bf16.mxu0 0
  %689 = vmatpush1.bf16.msra.mxu0 0
  %690 = vmatprep.subr.bf16.mxu0 0
  %691 = vmatpush1.bf16.msra.mxu0 0
  %692 = vmatprep.subr.bf16.mxu0 0
  %693 = vmatpush1.bf16.msra.mxu0 0
  %694 = vmatprep.subr.bf16.mxu0 0
  %695 = vmatpush1.bf16.msra.mxu0 0
  %696 = vmatprep.subr.bf16.mxu0 0
  %697 = vmatpush1.bf16.msra.mxu0 0
  %698 = vmatprep.subr.bf16.mxu0 0
  %699 = vmatpush1.bf16.msra.mxu0 0
  %700 = vmatprep.mubr.bf16.mxu0 0
  %701 = vmatmul.mubr.bf16.gmra.mrb[0].mxu0 %v666
  %v702 = vpop.f32.mrb[0].mxu0
  %v703 = vadd.f32 0.0, %v702
  %v704 = vpop.f32.mrb[0].mxu0
  %v705 = vpop.f32.mrb[0].mxu0
  %v706 = vpop.f32.mrb[0].mxu0
  %707 = vdwg.mxu0
  %v708 = vadd.f32 %v221, %v703
  %v709 = vmul.f32 %v708, 0.5
  %v710 = vtanh.pop %v709
  %v711 = vadd.f32 %v710, 1.0
  %v712 = vmul.f32 %v711, 0.5
  %v713 = vtanh.pop %v708
  %v714 = vmul.f32 %v712, %v654
  %716 = vrot.lane.b32.xlu0 %v713, 64
  %v717 = vpop.permute.xlu0 %716
  %v719 = vmul.f32 %v712, %v717
  %721 = vrot.lane.b32.xlu0 %v719, 32
  %v722 = vpop.permute.xlu0 %721
  %v724 = vadd.f32 %v714, %v722
  %v725 = vtanh.pop %v724
  %727 = vrot.lane.b32.xlu0 %v725, 64
  %v728 = vpop.permute.xlu0 %727
  %v730 = vmul.f32 %v712, %v728
  %v731 = vpack.c.bf16 %v730, %v730
  %733 = vrot.lane.b32.xlu0 %v731, 32
  %v734 = vpop.permute.xlu0 %733
  %v736 = vsel %vm244, %v734, 0
  %738 = vmatprep.subr.bf16.mxu0 0
  %739 = vmatpush1.bf16.msra.mxu0 %v240
  %740 = vmatprep.subr.bf16.mxu0 0
  %741 = vmatpush1.bf16.msra.mxu0 %v241
  %742 = vmatprep.subr.bf16.mxu0 0
  %743 = vmatpush1.bf16.msra.mxu0 0
  %744 = vmatprep.subr.bf16.mxu0 0
  %745 = vmatpush1.bf16.msra.mxu0 0
  %746 = vmatprep.subr.bf16.mxu0 0
  %747 = vmatpush1.bf16.msra.mxu0 0
  %748 = vmatprep.subr.bf16.mxu0 0
  %749 = vmatpush1.bf16.msra.mxu0 0
  %750 = vmatprep.subr.bf16.mxu0 0
  %751 = vmatpush1.bf16.msra.mxu0 0
  %752 = vmatprep.subr.bf16.mxu0 0
  %753 = vmatpush1.bf16.msra.mxu0 0
  %754 = vmatprep.subr.bf16.mxu0 0
  %755 = vmatpush1.bf16.msra.mxu0 0
  %756 = vmatprep.subr.bf16.mxu0 0
  %757 = vmatpush1.bf16.msra.mxu0 0
  %758 = vmatprep.subr.bf16.mxu0 0
  %759 = vmatpush1.bf16.msra.mxu0 0
  %760 = vmatprep.subr.bf16.mxu0 0
  %761 = vmatpush1.bf16.msra.mxu0 0
  %762 = vmatprep.subr.bf16.mxu0 0
  %763 = vmatpush1.bf16.msra.mxu0 0
  %764 = vmatprep.subr.bf16.mxu0 0
  %765 = vmatpush1.bf16.msra.mxu0 0
  %766 = vmatprep.subr.bf16.mxu0 0
  %767 = vmatpush1.bf16.msra.mxu0 0
  %768 = vmatprep.subr.bf16.mxu0 0
  %769 = vmatpush1.bf16.msra.mxu0 0
  %770 = vmatprep.mubr.bf16.mxu0 0
  %771 = vmatmul.mubr.bf16.gmra.mrb[0].mxu0 %v736
  %v772 = vpop.f32.mrb[0].mxu0
  %v773 = vadd.f32 0.0, %v772
  %v774 = vpop.f32.mrb[0].mxu0
  %v775 = vpop.f32.mrb[0].mxu0
  %v776 = vpop.f32.mrb[0].mxu0
  %777 = vdwg.mxu0
  %v778 = vadd.f32 %v224, %v773
  %v779 = vmul.f32 %v778, 0.5
  %v780 = vtanh.pop %v779
  %v781 = vadd.f32 %v780, 1.0
  %v782 = vmul.f32 %v781, 0.5
  %v783 = vtanh.pop %v778
  %v784 = vmul.f32 %v782, %v724
  %786 = vrot.lane.b32.xlu0 %v783, 64
  %v787 = vpop.permute.xlu0 %786
  %v789 = vmul.f32 %v782, %v787
  %791 = vrot.lane.b32.xlu0 %v789, 32
  %v792 = vpop.permute.xlu0 %791
  %v794 = vadd.f32 %v784, %v792
  %v795 = vtanh.pop %v794
  %797 = vrot.lane.b32.xlu0 %v795, 64
  %v798 = vpop.permute.xlu0 %797
  %v800 = vmul.f32 %v782, %v798
  %v801 = vmul.f32 %v226, 0.5
  %v802 = vtanh.pop %v801
  %v803 = vadd.f32 %v802, 1.0
  %v804 = vmul.f32 %v803, 0.5
  %v805 = vtanh.pop %v226
  %807 = vrot.lane.b32.xlu0 %v805, 64
  %v808 = vpop.permute.xlu0 %807
  %v810 = vmul.f32 %v804, %v808
  %v811 = vtanh.pop %v810
  %813 = vrot.lane.b32.xlu0 %v811, 96
  %v814 = vpop.permute.xlu0 %813
  %v816 = vmul.f32 %v804, %v814
  %v817 = vld [vmem:[%s4] sm:$0xff]
  %v818 = vld [vmem:[%s4 + $0x8] sm:$0xff]
  %v819 = vld [vmem:[%s4 + $0x10] sm:$0xff]
  %v820 = vld [vmem:[%s4 + $0x18] sm:$0xff]
  %v821 = vld [vmem:[%s5] sm:$0xff]
  %v822 = vld [vmem:[%s5 + $0x8] sm:$0xff]
  %v823 = vld [vmem:[%s5 + $0x10] sm:$0xff]
  %v824 = vld [vmem:[%s5 + $0x18] sm:$0xff]
  %826 = vrot.lane.b32.xlu0 %v816, 32
  %v827 = vpop.permute.xlu0 %826
  %v828 = vsel %vm244, %v827, 0
  %830 = vmatprep.subr.mxu0 0.0
  %831 = vmatpush1.msra.mxu0 %v821
  %832 = vmatprep.subr.mxu0 0.0
  %833 = vmatpush1.msra.mxu0 %v822
  %834 = vmatprep.subr.mxu0 0.0
  %835 = vmatpush1.msra.mxu0 %v823
  %836 = vmatprep.subr.mxu0 0.0
  %837 = vmatpush1.msra.mxu0 %v824
  %838 = vmatprep.subr.mxu0 0.0
  %839 = vmatpush1.msra.mxu0 0.0
  %840 = vmatprep.subr.mxu0 0.0
  %841 = vmatpush1.msra.mxu0 0.0
  %842 = vmatprep.subr.mxu0 0.0
  %843 = vmatpush1.msra.mxu0 0.0
  %844 = vmatprep.subr.mxu0 0.0
  %845 = vmatpush1.msra.mxu0 0.0
  %846 = vmatprep.subr.mxu0 0.0
  %847 = vmatpush1.msra.mxu0 0.0
  %848 = vmatprep.subr.mxu0 0.0
  %849 = vmatpush1.msra.mxu0 0.0
  %850 = vmatprep.subr.mxu0 0.0
  %851 = vmatpush1.msra.mxu0 0.0
  %852 = vmatprep.subr.mxu0 0.0
  %853 = vmatpush1.msra.mxu0 0.0
  %854 = vmatprep.subr.mxu0 0.0
  %855 = vmatpush1.msra.mxu0 0.0
  %856 = vmatprep.subr.mxu0 0.0
  %857 = vmatpush1.msra.mxu0 0.0
  %858 = vmatprep.subr.mxu0 0.0
  %859 = vmatpush1.msra.mxu0 0.0
  %860 = vmatprep.subr.mxu0 0.0
  %861 = vmatpush1.msra.mxu0 0.0
  %862 = vmatprep.subr.mxu0 0.0
  %863 = vmatpush1.msra.mxu0 0.0
  %864 = vmatprep.subr.mxu0 0.0
  %865 = vmatpush1.msra.mxu0 0.0
  %866 = vmatprep.subr.mxu0 0.0
  %867 = vmatpush1.msra.mxu0 0.0
  %868 = vmatprep.subr.mxu0 0.0
  %869 = vmatpush1.msra.mxu0 0.0
  %870 = vmatprep.subr.mxu0 0.0
  %871 = vmatpush1.msra.mxu0 0.0
  %872 = vmatprep.subr.mxu0 0.0
  %873 = vmatpush1.msra.mxu0 0.0
  %874 = vmatprep.subr.mxu0 0.0
  %875 = vmatpush1.msra.mxu0 0.0
  %876 = vmatprep.subr.mxu0 0.0
  %877 = vmatpush1.msra.mxu0 0.0
  %878 = vmatprep.subr.mxu0 0.0
  %879 = vmatpush1.msra.mxu0 0.0
  %880 = vmatprep.subr.mxu0 0.0
  %881 = vmatpush1.msra.mxu0 0.0
  %882 = vmatprep.subr.mxu0 0.0
  %883 = vmatpush1.msra.mxu0 0.0
  %884 = vmatprep.subr.mxu0 0.0
  %885 = vmatpush1.msra.mxu0 0.0
  %886 = vmatprep.subr.mxu0 0.0
  %887 = vmatpush1.msra.mxu0 0.0
  %888 = vmatprep.subr.mxu0 0.0
  %889 = vmatpush1.msra.mxu0 0.0
  %890 = vmatprep.subr.mxu0 0.0
  %891 = vmatpush1.msra.mxu0 0.0
  %892 = vmatprep.subr.mxu0 0.0
  %893 = vmatpush1.msra.mxu0 0.0
  %894 = vmatprep.mubr.f32.mxu0 0.0
  %895 = vmatmul.mubr.f32.gmra.mrb[0].mxu0 %v828
  %v896 = vpop.f32.mrb[0].mxu0
  %v897 = vadd.f32 0.0, %v896
  %v898 = vpop.f32.mrb[0].mxu0
  %899 = vdwg.mxu0
  %901 = vrot.lane.b32.xlu0 %v800, 32
  %v902 = vpop.permute.xlu0 %901
  %v903 = vsel %vm244, %v902, 0
  %905 = vmatprep.subr.mxu0 0.0
  %906 = vmatpush1.msra.mxu0 %v817
  %907 = vmatprep.subr.mxu0 0.0
  %908 = vmatpush1.msra.mxu0 %v818
  %909 = vmatprep.subr.mxu0 0.0
  %910 = vmatpush1.msra.mxu0 %v819
  %911 = vmatprep.subr.mxu0 0.0
  %912 = vmatpush1.msra.mxu0 %v820
  %913 = vmatprep.subr.mxu0 0.0
  %914 = vmatpush1.msra.mxu0 0.0
  %915 = vmatprep.subr.mxu0 0.0
  %916 = vmatpush1.msra.mxu0 0.0
  %917 = vmatprep.subr.mxu0 0.0
  %918 = vmatpush1.msra.mxu0 0.0
  %919 = vmatprep.subr.mxu0 0.0
  %920 = vmatpush1.msra.mxu0 0.0
  %921 = vmatprep.subr.mxu0 0.0
  %922 = vmatpush1.msra.mxu0 0.0
  %923 = vmatprep.subr.mxu0 0.0
  %924 = vmatpush1.msra.mxu0 0.0
  %925 = vmatprep.subr.mxu0 0.0
  %926 = vmatpush1.msra.mxu0 0.0
  %927 = vmatprep.subr.mxu0 0.0
  %928 = vmatpush1.msra.mxu0 0.0
  %929 = vmatprep.subr.mxu0 0.0
  %930 = vmatpush1.msra.mxu0 0.0
  %931 = vmatprep.subr.mxu0 0.0
  %932 = vmatpush1.msra.mxu0 0.0
  %933 = vmatprep.subr.mxu0 0.0
  %934 = vmatpush1.msra.mxu0 0.0
  %935 = vmatprep.subr.mxu0 0.0
  %936 = vmatpush1.msra.mxu0 0.0
  %937 = vmatprep.subr.mxu0 0.0
  %938 = vmatpush1.msra.mxu0 0.0
  %939 = vmatprep.subr.mxu0 0.0
  %940 = vmatpush1.msra.mxu0 0.0
  %941 = vmatprep.subr.mxu0 0.0
  %942 = vmatpush1.msra.mxu0 0.0
  %943 = vmatprep.subr.mxu0 0.0
  %944 = vmatpush1.msra.mxu0 0.0
  %945 = vmatprep.subr.mxu0 0.0
  %946 = vmatpush1.msra.mxu0 0.0
  %947 = vmatprep.subr.mxu0 0.0
  %948 = vmatpush1.msra.mxu0 0.0
  %949 = vmatprep.subr.mxu0 0.0
  %950 = vmatpush1.msra.mxu0 0.0
  %951 = vmatprep.subr.mxu0 0.0
  %952 = vmatpush1.msra.mxu0 0.0
  %953 = vmatprep.subr.mxu0 0.0
  %954 = vmatpush1.msra.mxu0 0.0
  %955 = vmatprep.subr.mxu0 0.0
  %956 = vmatpush1.msra.mxu0 0.0
  %957 = vmatprep.subr.mxu0 0.0
  %958 = vmatpush1.msra.mxu0 0.0
  %959 = vmatprep.subr.mxu0 0.0
  %960 = vmatpush1.msra.mxu0 0.0
  %961 = vmatprep.subr.mxu0 0.0
  %962 = vmatpush1.msra.mxu0 0.0
  %963 = vmatprep.subr.mxu0 0.0
  %964 = vmatpush1.msra.mxu0 0.0
  %965 = vmatprep.subr.mxu0 0.0
  %966 = vmatpush1.msra.mxu0 0.0
  %967 = vmatprep.subr.mxu0 0.0
  %968 = vmatpush1.msra.mxu0 0.0
  %969 = vmatprep.mubr.f32.mxu0 0.0
  %970 = vmatmul.mubr.f32.gmra.mrb[0].mxu0 %v903
  %v971 = vpop.f32.mrb[0].mxu0
  %v972 = vadd.f32 %v897, %v971
  %v973 = vpop.f32.mrb[0].mxu0
  %974 = vdwg.mxu0
  %v975 = vld [vmem:[%s6] sm:$0x1]
  %v977 = vlaneseq
  %v978 = vshrl.u32 %v977, 7
  %v979 = vsub.s32 0, %v978
  %v980 = vrot.slane %v975, %v979
  %v982 = vadd.f32 %v972, %v980
  %vm983 = vcmask 64512
  %984 = vst.msk [vmem:[%s7] sm:$0xff] %vm983, %v982
  // Predicated region
  $region30: #{lstm_classifier_forward.1} parent=0 // pred_check
    _
  $region31: #{lstm_classifier_forward.1} parent=0 // pred_check_branch
    %986 = sbr.rel (0) target = $region33
  $region32: #{lstm_classifier_forward.1} parent=0 // pred_region
    _
  $region33: #{lstm_classifier_forward.1} parent=0 // pred_fallthru
    _
  // Predicated region
  $region34: #{lstm_classifier_forward.1} parent=0 // pred_check
    _
  $region35: #{lstm_classifier_forward.1} parent=0 // pred_check_branch
    %988 = sbr.rel (0) target = $region37
  $region36: #{lstm_classifier_forward.1} parent=0 // pred_region
    _
  $region37: #{lstm_classifier_forward.1} parent=0 // pred_fallthru
    _

</llo_original>
